<compile_context>
chip_gen: v5e
topology: v5e:2x2
jax: 0.10.0
libtpu: 0.0.40
codegen_flags: <defaults>
</compile_context>

<pallas_src>
import jax
import jax.numpy as jnp
from jax import lax
from jax.experimental import pallas as pl
from jax.experimental.pallas import tpu as pltpu

# ---------------------------------------------------------------------------
# "Dataset" constants.  The reference reads Data/aa_sim.csv to get the amino-
# acid vocabulary; we hardcode the 20 standard amino acids deterministically.
# ---------------------------------------------------------------------------
AA = list("ACDEFGHIKLMNPQRSTVWY")
VOCABULARY_SIZE = len(AA)   # 20
EMB_SIZE = 32


def _cbow_kernel(word_ref, ctx_ref, emb_w_ref, emb_c_t_ref, out_ref):
    word = word_ref[...]          # (W, TB) int32 token ids   (batch on lanes)
    ctx = ctx_ref[...]            # (C, TB) int32 token ids
    table_w = emb_w_ref[...]      # (V, E)  f32
    table_c_t = emb_c_t_ref[...]  # (E, V)  f32  (pre-transposed in wrapper)

    w, tb = word.shape
    c, _ = ctx.shape
    v, e = table_w.shape

    # --- context path: one-hot counts summed over C BEFORE the matmul -----
    # counts[vv, b] = #{c : ctx[c, b] == vv}
    iota_vc = lax.broadcasted_iota(jnp.int32, (c, v, tb), 1)
    counts = (ctx[:, None, :] == iota_vc).astype(jnp.float32).sum(axis=0)   # (V, TB)

    # c_sum^T = emb_c^T @ counts : (E, V) @ (V, TB) -> (E, TB)   [MXU, N=TB lanes]
    c_sum_t = jnp.dot(table_c_t, counts, preferred_element_type=jnp.float32)

    # s^T[vv, b] = table_w[vv, :] . c_sum[b, :] : (V, E) @ (E, TB) -> (V, TB)
    s_t = jnp.dot(table_w, c_sum_t, preferred_element_type=jnp.float32)

    # --- word path: scores[w, b] = s^T[word[w, b], b]  (one-hot select) ----
    iota_vw = lax.broadcasted_iota(jnp.int32, (w, v, tb), 1)
    oh_w = word[:, None, :] == iota_vw                                      # (W, V, TB)
    scores = jnp.where(oh_w, s_t[None, :, :], 0.0).sum(axis=1)              # (W, TB)

    out_ref[...] = jax.nn.sigmoid(scores)


def cbow_forward(word, context, emb_w, emb_c, *, block_b=512):
    """Pallas implementation of CBOW.forward(x) with x = (word, context)."""
    b, w = word.shape
    _, c = context.shape
    v, e = emb_w.shape

    # Lane-dense layout plumbing (tiny int32 ids / 20x32 table): batch last.
    word_t = word.T.astype(jnp.int32)       # (W, B)
    ctx_t = context.T.astype(jnp.int32)     # (C, B)
    emb_c_t = emb_c.T                       # (E, V)

    tb = min(b, block_b)
    grid = (pl.cdiv(b, tb),)

    out_t = pl.pallas_call(
        _cbow_kernel,
        out_shape=jax.ShapeDtypeStruct((w, b), jnp.float32),
        grid_spec=pl.GridSpec(
            grid=grid,
            in_specs=[
                pl.BlockSpec((w, tb), lambda i: (0, i)),   # word ids  (W, TB)
                pl.BlockSpec((c, tb), lambda i: (0, i)),   # ctx ids   (C, TB)
                pl.BlockSpec((v, e), lambda i: (0, 0)),    # emb_w,   VMEM-resident
                pl.BlockSpec((e, v), lambda i: (0, 0)),    # emb_c^T, VMEM-resident
            ],
            out_specs=pl.BlockSpec((w, tb), lambda i: (0, i)),
        ),
        compiler_params=pltpu.CompilerParams(
            dimension_semantics=("parallel",),
        ),
    )(word_t, ctx_t, emb_w, emb_c_t)

    return out_t.T                           # back to (B, W)


class CBOWPallas:
    """Mirror of the PyTorch CBOW module."""

    def __init__(self, emb_size, key):
        kw, kc = jax.random.split(key)
        # nn.Embedding default init is N(0, 1); reproduce deterministically.
        self.emb_w = jax.random.normal(
            kw, (VOCABULARY_SIZE, emb_size), dtype=jnp.float32)
        self.emb_c = jax.random.normal(
            kc, (VOCABULARY_SIZE, emb_size), dtype=jnp.float32)

    @property
    def emb(self):
        return self.emb_w

    def forward(self, x):
        word, context = x
        return cbow_forward(word, context, self.emb_w, self.emb_c)


def _cbow_reference(word, context, emb_w, emb_c):
    """Pure-JAX reference matching the PyTorch op order exactly."""
    w_emb = jnp.take(emb_w, word, axis=0)                 # (B, W, E)
    c_emb = jnp.take(emb_c, context, axis=0)              # (B, C, E)
    scores = jnp.einsum('bwe,bce->bwc', w_emb, c_emb)     # bmm
    scores = scores.sum(axis=2)                           # (B, W)
    return jax.nn.sigmoid(scores)


if __name__ == "__main__":
    key = jax.random.PRNGKey(0)
    k_params, k_word, k_ctx, k_word2, k_ctx2 = jax.random.split(key, 5)

    model = CBOWPallas(EMB_SIZE, k_params)

    # Small deterministic inputs: batch=2, target words=8, context size=8.
    batch, n_word, n_ctx = 2, 8, 8
    word = jax.random.randint(
        k_word, (batch, n_word), minval=0, maxval=VOCABULARY_SIZE,
        dtype=jnp.int32)
    context = jax.random.randint(
        k_ctx, (batch, n_ctx), minval=0, maxval=VOCABULARY_SIZE,
        dtype=jnp.int32)

    out = model.forward((word, context))
    out = jax.block_until_ready(out)

    ref = _cbow_reference(word, context, model.emb_w, model.emb_c)
    assert out.shape == (batch, n_word) and out.dtype == jnp.float32
    assert bool(jnp.allclose(out, ref, rtol=1e-5, atol=1e-5))

    # Second check: multi-step grid with lane-dense 128-wide tiles and a
    # padded tail block (B=200, block_b=128 -> grid=2).
    b2 = 200
    word2 = jax.random.randint(
        k_word2, (b2, n_word), minval=0, maxval=VOCABULARY_SIZE,
        dtype=jnp.int32)
    context2 = jax.random.randint(
        k_ctx2, (b2, n_ctx), minval=0, maxval=VOCABULARY_SIZE,
        dtype=jnp.int32)
    out2 = cbow_forward(word2, context2, model.emb_w, model.emb_c,
                        block_b=128)
    out2 = jax.block_until_ready(out2)
    ref2 = _cbow_reference(word2, context2, model.emb_w, model.emb_c)
    assert out2.shape == (b2, n_word)
    assert bool(jnp.allclose(out2, ref2, rtol=1e-5, atol=1e-5))

    print("KERNEL_OK")
</pallas_src>

<mosaic_0001>
module attributes {stable_mosaic.version = 11 : i64} {
  func.func @_cbow_kernel(%arg0: i32, %arg1: memref<8x2xi32, #tpu.memory_space<vmem>>, %arg2: memref<8x2xi32, #tpu.memory_space<vmem>>, %arg3: memref<20x32xf32, #tpu.memory_space<vmem>>, %arg4: memref<32x20xf32, #tpu.memory_space<vmem>>, %arg5: memref<8x2xf32, #tpu.memory_space<vmem>>) attributes {dimension_semantics = [#tpu.dimension_semantics<parallel>], iteration_bounds = array<i64: 1>, scalar_prefetch = 0 : i64, scratch_operands = 0 : i64, tpu.core_type = #tpu.core_type<tc>, window_params = [{transform_indices = @transform_0, window_bounds = array<i64: 8, 2>}, {transform_indices = @transform_1, window_bounds = array<i64: 8, 2>}, {pipeline_mode = #tpu.pipeline_mode<synchronous>, transform_indices = @transform_2, window_bounds = array<i64: 20, 32>}, {pipeline_mode = #tpu.pipeline_mode<synchronous>, transform_indices = @transform_3, window_bounds = array<i64: 32, 20>}, {transform_indices = @transform_4, window_bounds = array<i64: 8, 2>}]} {
    %c0 = arith.constant 0 : index
    %c0_0 = arith.constant 0 : index
    %0 = vector.load %arg1[%c0, %c0_0] : memref<8x2xi32, #tpu.memory_space<vmem>>, vector<8x2xi32>
    %c0_1 = arith.constant 0 : index
    %c0_2 = arith.constant 0 : index
    %1 = vector.load %arg2[%c0_1, %c0_2] : memref<8x2xi32, #tpu.memory_space<vmem>>, vector<8x2xi32>
    %c0_3 = arith.constant 0 : index
    %c0_4 = arith.constant 0 : index
    %2 = vector.load %arg3[%c0_3, %c0_4] : memref<20x32xf32, #tpu.memory_space<vmem>>, vector<20x32xf32>
    %c0_5 = arith.constant 0 : index
    %c0_6 = arith.constant 0 : index
    %3 = vector.load %arg4[%c0_5, %c0_6] : memref<32x20xf32, #tpu.memory_space<vmem>>, vector<32x20xf32>
    %4 = tpu.iota {dimensions = array<i32: 1>} : vector<8x20x2xi32>
    %5 = vector.shape_cast %1 : vector<8x2xi32> to vector<8x1x2xi32>
    %6 = vector.broadcast %5 : vector<8x1x2xi32> to vector<8x20x2xi32>
    %7 = arith.cmpi eq, %6, %4 : vector<8x20x2xi32>
    %8 = arith.extui %7 : vector<8x20x2xi1> to vector<8x20x2xi32>
    %9 = arith.sitofp %8 : vector<8x20x2xi32> to vector<8x20x2xf32>
    %cst = arith.constant dense<0.000000e+00> : vector<20x2xf32>
    %10 = vector.multi_reduction <add>, %9, %cst [0] : vector<8x20x2xf32> to vector<20x2xf32>
    %cst_7 = arith.constant dense<0.000000e+00> : vector<32x2xf32>
    %11 = tpu.matmul %3, %10, %cst_7 {dimension_numbers = #tpu.dot_dimension_numbers<[1], [0], [0], [1], [0, 0, 1, 1], [], []>} : vector<32x20xf32>, vector<20x2xf32>, vector<32x2xf32> -> vector<32x2xf32>
    %cst_8 = arith.constant dense<0.000000e+00> : vector<20x2xf32>
    %12 = tpu.matmul %2, %11, %cst_8 {dimension_numbers = #tpu.dot_dimension_numbers<[1], [0], [0], [1], [0, 0, 1, 1], [], []>} : vector<20x32xf32>, vector<32x2xf32>, vector<20x2xf32> -> vector<20x2xf32>
    %13 = tpu.iota {dimensions = array<i32: 1>} : vector<8x20x2xi32>
    %14 = vector.shape_cast %0 : vector<8x2xi32> to vector<8x1x2xi32>
    %15 = vector.broadcast %14 : vector<8x1x2xi32> to vector<8x20x2xi32>
    %16 = arith.cmpi eq, %15, %13 : vector<8x20x2xi32>
    %17 = vector.shape_cast %12 : vector<20x2xf32> to vector<1x20x2xf32>
    %cst_9 = arith.constant 0.000000e+00 : f32
    %18 = vector.shape_cast %17 : vector<1x20x2xf32> to vector<1x20x2xf32>
    %19 = vector.broadcast %18 : vector<1x20x2xf32> to vector<8x20x2xf32>
    %20 = vector.broadcast %cst_9 : f32 to vector<8x20x2xf32>
    %21 = arith.select %16, %19, %20 : vector<8x20x2xi1>, vector<8x20x2xf32>
    %cst_10 = arith.constant dense<0.000000e+00> : vector<8x2xf32>
    %22 = vector.multi_reduction <add>, %21, %cst_10 [1] : vector<8x20x2xf32> to vector<8x2xf32>
    %23 = arith.negf %22 : vector<8x2xf32>
    %24 = math.exp %23 : vector<8x2xf32>
    %cst_11 = arith.constant 1.000000e+00 : f32
    %25 = vector.broadcast %cst_11 : f32 to vector<8x2xf32>
    %26 = arith.addf %25, %24 : vector<8x2xf32>
    %27 = arith.divf %25, %26 : vector<8x2xf32>
    %c0_12 = arith.constant 0 : index
    %c0_13 = arith.constant 0 : index
    %28 = vector.load %arg5[%c0_12, %c0_13] : memref<8x2xf32, #tpu.memory_space<vmem>>, vector<8x2xf32>
    tpu.vector_store %arg5[%c0_12, %c0_13], %27 {strides = array<i32>} : memref<8x2xf32, #tpu.memory_space<vmem>>, vector<8x2xf32>,
    return
  }
  func.func @transform_0(%arg0: i32) -> (i32, i32) {
    %c0_i32 = arith.constant 0 : i32
    %c0_i32_0 = arith.constant 0 : i32
    return %c0_i32, %arg0 : i32, i32
  }
  func.func @transform_1(%arg0: i32) -> (i32, i32) {
    %c0_i32 = arith.constant 0 : i32
    %c0_i32_0 = arith.constant 0 : i32
    return %c0_i32, %arg0 : i32, i32
  }
  func.func @transform_2(%arg0: i32) -> (i32, i32) {
    %c0_i32 = arith.constant 0 : i32
    %c0_i32_0 = arith.constant 0 : i32
    %c0_i32_1 = arith.constant 0 : i32
    return %c0_i32, %c0_i32_0 : i32, i32
  }
  func.func @transform_3(%arg0: i32) -> (i32, i32) {
    %c0_i32 = arith.constant 0 : i32
    %c0_i32_0 = arith.constant 0 : i32
    %c0_i32_1 = arith.constant 0 : i32
    return %c0_i32, %c0_i32_0 : i32, i32
  }
  func.func @transform_4(%arg0: i32) -> (i32, i32) {
    %c0_i32 = arith.constant 0 : i32
    %c0_i32_0 = arith.constant 0 : i32
    return %c0_i32, %arg0 : i32, i32
  }
}

</mosaic_0001>

<llo_original>
// kernel: tpu_custom_call.1
$region0: #{tpu_custom_call.1}
  #allocation0 [shape = 'u32[]', space=smem, size = 0x4, offset = 0x4, fixed_abs, tag = 'smem constant byte address 0x4 - core index']
  #allocation1 [shape = 'u32[72,128]{1,0:T(1,128)}', space=vmem, size = 0x9000, scoped, tag = 'internal scratch']
  %s0 = inlined_call_operand.vmem [shape: s32[8,2], index: 0, kind: input, shape index: {}]
  %s1 = inlined_call_operand.vmem [shape: s32[8,2], index: 1, kind: input, shape index: {}]
  %s2 = inlined_call_operand.vmem [shape: f32[20,32], index: 2, kind: input, shape index: {}]
  %s3 = inlined_call_operand.vmem [shape: f32[32,20], index: 3, kind: input, shape index: {}]
  %s4 = inlined_call_operand.vmem [shape: f32[8,2], index: 4, kind: output, shape index: {}]
  %s5 = sld [smem:[#allocation0]]
  $region26: #{tpu_custom_call.1} parent=0
    _
  %s7 = ssub.s32 1, %s5
  %s8 = scalar_select 0, %s7, %s5
  // Predicated region
  $region2: #{tpu_custom_call.1} parent=0 // pred_check
    _
  $region3: #{tpu_custom_call.1} parent=0 // pred_check_branch
    %10 = sbr.rel (0) target = $region5
  $region4: #{tpu_custom_call.1} parent=0 // pred_region
    _
  $region5: #{tpu_custom_call.1} parent=0 // pred_fallthru
    _
  // Predicated region
  $region6: #{tpu_custom_call.1} parent=0 // pred_check
    _
  $region7: #{tpu_custom_call.1} parent=0 // pred_check_branch
    %12 = sbr.rel (0) target = $region9
  $region8: #{tpu_custom_call.1} parent=0 // pred_region
    _
  $region9: #{tpu_custom_call.1} parent=0 // pred_fallthru
    _
  // Predicated region
  $region10: #{tpu_custom_call.1} parent=0 // pred_check
    _
  $region11: #{tpu_custom_call.1} parent=0 // pred_check_branch
    %14 = sbr.rel (0) target = $region13
  $region12: #{tpu_custom_call.1} parent=0 // pred_region
    _
  $region13: #{tpu_custom_call.1} parent=0 // pred_fallthru
    _
  // Predicated region
  $region14: #{tpu_custom_call.1} parent=0 // pred_check
    _
  $region15: #{tpu_custom_call.1} parent=0 // pred_check_branch
    %16 = sbr.rel (0) target = $region17
  $region16: #{tpu_custom_call.1} parent=0 // pred_region
    _
  $region17: #{tpu_custom_call.1} parent=0 // pred_fallthru
    _
  %v17 = vld [vmem:[%s0] sm:$0xff]
  %v18 = vld [vmem:[%s1] sm:$0xff]
  %v19 = vld [vmem:[%s2] sm:$0xff]
  %v20 = vld [vmem:[%s2 + $0x8] sm:$0xff]
  %v21 = vld [vmem:[%s2 + $0x10] sm:$0xf]
  %v22 = vld [vmem:[%s3] sm:$0xff]
  %v23 = vld [vmem:[%s3 + $0x8] sm:$0xff]
  %v24 = vld [vmem:[%s3 + $0x10] sm:$0xff]
  %v25 = vld [vmem:[%s3 + $0x18] sm:$0xff]
  %v26 = vlaneseq
  %v27 = vshrl.u32 %v26, 7
  %v28 = vadd.s32 %v27, 8
  %v29 = vadd.s32 %v27, 16
  %v30 = vrot.slane %v18, 1
  %v31 = vrot.slane %v18, 2
  %v32 = vrot.slane %v18, 3
  %v33 = vrot.slane %v18, 4
  %v34 = vrot.slane %v18, 5
  %v35 = vrot.slane %v18, 6
  %v36 = vrot.slane %v18, 7
  %v37 = vperm.slane %v18, 0
  %v38 = vperm.slane %v30, 0
  %v39 = vperm.slane %v31, 0
  %v40 = vperm.slane %v32, 0
  %v41 = vperm.slane %v33, 0
  %v42 = vperm.slane %v34, 0
  %v43 = vperm.slane %v35, 0
  %v44 = vperm.slane %v36, 0
  %vm45 = vcmp.eq.s32.totalorder %v37, %v27
  %vm46 = vcmp.eq.s32.totalorder %v37, %v28
  %vm47 = vcmp.eq.s32.totalorder %v37, %v29
  %vm48 = vcmp.eq.s32.totalorder %v38, %v27
  %vm49 = vcmp.eq.s32.totalorder %v38, %v28
  %vm50 = vcmp.eq.s32.totalorder %v38, %v29
  %vm51 = vcmp.eq.s32.totalorder %v39, %v27
  %vm52 = vcmp.eq.s32.totalorder %v39, %v28
  %vm53 = vcmp.eq.s32.totalorder %v39, %v29
  %vm54 = vcmp.eq.s32.totalorder %v40, %v27
  %vm55 = vcmp.eq.s32.totalorder %v40, %v28
  %vm56 = vcmp.eq.s32.totalorder %v40, %v29
  %vm57 = vcmp.eq.s32.totalorder %v41, %v27
  %vm58 = vcmp.eq.s32.totalorder %v41, %v28
  %vm59 = vcmp.eq.s32.totalorder %v41, %v29
  %vm60 = vcmp.eq.s32.totalorder %v42, %v27
  %vm61 = vcmp.eq.s32.totalorder %v42, %v28
  %vm62 = vcmp.eq.s32.totalorder %v42, %v29
  %vm63 = vcmp.eq.s32.totalorder %v43, %v27
  %vm64 = vcmp.eq.s32.totalorder %v43, %v28
  %vm65 = vcmp.eq.s32.totalorder %v43, %v29
  %vm66 = vcmp.eq.s32.totalorder %v44, %v27
  %vm67 = vcmp.eq.s32.totalorder %v44, %v28
  %vm68 = vcmp.eq.s32.totalorder %v44, %v29
  %v69 = vsel %vm45, 1, 0
  %v70 = vsel %vm46, 1, 0
  %v71 = vsel %vm47, 1, 0
  %v72 = vsel %vm48, 1, 0
  %v73 = vsel %vm49, 1, 0
  %v74 = vsel %vm50, 1, 0
  %v75 = vsel %vm51, 1, 0
  %v76 = vsel %vm52, 1, 0
  %v77 = vsel %vm53, 1, 0
  %v78 = vsel %vm54, 1, 0
  %v79 = vsel %vm55, 1, 0
  %v80 = vsel %vm56, 1, 0
  %v81 = vsel %vm57, 1, 0
  %v82 = vsel %vm58, 1, 0
  %v83 = vsel %vm59, 1, 0
  %v84 = vsel %vm60, 1, 0
  %v85 = vsel %vm61, 1, 0
  %v86 = vsel %vm62, 1, 0
  %v87 = vsel %vm63, 1, 0
  %v88 = vsel %vm64, 1, 0
  %v89 = vsel %vm65, 1, 0
  %v90 = vsel %vm66, 1, 0
  %v91 = vsel %vm67, 1, 0
  %v92 = vsel %vm68, 1, 0
  %v93 = vcvt.s32.f32 %v69
  %v94 = vcvt.s32.f32 %v70
  %v95 = vcvt.s32.f32 %v71
  %v96 = vcvt.s32.f32 %v72
  %v97 = vcvt.s32.f32 %v73
  %v98 = vcvt.s32.f32 %v74
  %v99 = vcvt.s32.f32 %v75
  %v100 = vcvt.s32.f32 %v76
  %v101 = vcvt.s32.f32 %v77
  %v102 = vcvt.s32.f32 %v78
  %v103 = vcvt.s32.f32 %v79
  %v104 = vcvt.s32.f32 %v80
  %v105 = vcvt.s32.f32 %v81
  %v106 = vcvt.s32.f32 %v82
  %v107 = vcvt.s32.f32 %v83
  %v108 = vcvt.s32.f32 %v84
  %v109 = vcvt.s32.f32 %v85
  %v110 = vcvt.s32.f32 %v86
  %v111 = vcvt.s32.f32 %v87
  %v112 = vcvt.s32.f32 %v88
  %v113 = vcvt.s32.f32 %v89
  %v114 = vcvt.s32.f32 %v90
  %v115 = vcvt.s32.f32 %v91
  %v116 = vcvt.s32.f32 %v92
  %vm117 = vcmask 15360
  %v118 = vsel %vm117, %v93, 0.0
  %v119 = vsel %vm117, %v96, 0.0
  %v120 = vadd.f32 %v118, %v119
  %v121 = vsel %vm117, %v99, 0.0
  %v122 = vadd.f32 %v120, %v121
  %v123 = vsel %vm117, %v102, 0.0
  %v124 = vadd.f32 %v122, %v123
  %v125 = vsel %vm117, %v105, 0.0
  %v126 = vadd.f32 %v124, %v125
  %v127 = vsel %vm117, %v108, 0.0
  %v128 = vadd.f32 %v126, %v127
  %v129 = vsel %vm117, %v111, 0.0
  %v130 = vadd.f32 %v128, %v129
  %v131 = vsel %vm117, %v114, 0.0
  %v132 = vadd.f32 %v130, %v131
  %v133 = vsel %vm117, %v94, 0.0
  %v134 = vsel %vm117, %v97, 0.0
  %v135 = vadd.f32 %v133, %v134
  %v136 = vsel %vm117, %v100, 0.0
  %v137 = vadd.f32 %v135, %v136
  %v138 = vsel %vm117, %v103, 0.0
  %v139 = vadd.f32 %v137, %v138
  %v140 = vsel %vm117, %v106, 0.0
  %v141 = vadd.f32 %v139, %v140
  %v142 = vsel %vm117, %v109, 0.0
  %v143 = vadd.f32 %v141, %v142
  %v144 = vsel %vm117, %v112, 0.0
  %v145 = vadd.f32 %v143, %v144
  %v146 = vsel %vm117, %v115, 0.0
  %v147 = vadd.f32 %v145, %v146
  %vm148 = vcmask 11264
  %v149 = vsel %vm148, %v95, 0.0
  %v150 = vsel %vm148, %v98, 0.0
  %v151 = vadd.f32 %v149, %v150
  %v152 = vsel %vm148, %v101, 0.0
  %v153 = vadd.f32 %v151, %v152
  %v154 = vsel %vm148, %v104, 0.0
  %v155 = vadd.f32 %v153, %v154
  %v156 = vsel %vm148, %v107, 0.0
  %v157 = vadd.f32 %v155, %v156
  %v158 = vsel %vm148, %v110, 0.0
  %v159 = vadd.f32 %v157, %v158
  %v160 = vsel %vm148, %v113, 0.0
  %v161 = vadd.f32 %v159, %v160
  %v162 = vsel %vm148, %v116, 0.0
  %v163 = vadd.f32 %v161, %v162
  %vm164 = vcmask 162816
  %v166 = vsel %vm164, %v22, 0
  %v169 = vsel %vm164, %v23, 0
  %v172 = vsel %vm164, %v24, 0
  %v175 = vsel %vm164, %v25, 0
  %vm177 = vcmask 1043456
  %v179 = vsel %vm177, %v163, 0
  %181 = vmatpush.msra.mxu0 0.0
  %182 = vmatpush.msra.mxu0 0.0
  %183 = vmatpush.msra.mxu0 0.0
  %184 = vmatpush.msra.mxu0 0.0
  %185 = vmatpush.msra.mxu0 0.0
  %186 = vmatpush.msra.mxu0 0.0
  %187 = vmatpush.msra.mxu0 0.0
  %188 = vmatpush.msra.mxu0 0.0
  %189 = vmatpush.msra.mxu0 0.0
  %190 = vmatpush.msra.mxu0 0.0
  %191 = vmatpush.msra.mxu0 0.0
  %192 = vmatpush.msra.mxu0 0.0
  %193 = vmatpush.msra.mxu0 0.0
  %194 = vmatpush.msra.mxu0 %v179
  %195 = vmatpush.msra.mxu0 %v147
  %196 = vmatpush.msra.mxu0 %v132
  %197 = vmatmul.f32.gmra.mxu0 %v166
  %v198 = vpop.f32.mrf.mxu0
  %v199 = vadd.f32 0.0, %v198
  %200 = vmatmul.f32.gmra.mxu0 %v169
  %v201 = vpop.f32.mrf.mxu0
  %v202 = vadd.f32 0.0, %v201
  %203 = vmatmul.f32.gmra.mxu0 %v172
  %v204 = vpop.f32.mrf.mxu0
  %v205 = vadd.f32 0.0, %v204
  %206 = vmatmul.f32.gmra.mxu0 %v175
  %v207 = vpop.f32.mrf.mxu0
  %v208 = vadd.f32 0.0, %v207
  %209 = vdwg.mxu0
  %vm210 = vcmask 261120
  %v212 = vsel %vm210, %v19, 0
  %v215 = vsel %vm210, %v20, 0
  %v218 = vsel %vm210, %v21, 0
  %220 = vmatpush.msra.mxu0 0.0
  %221 = vmatpush.msra.mxu0 0.0
  %222 = vmatpush.msra.mxu0 0.0
  %223 = vmatpush.msra.mxu0 0.0
  %224 = vmatpush.msra.mxu0 0.0
  %225 = vmatpush.msra.mxu0 0.0
  %226 = vmatpush.msra.mxu0 0.0
  %227 = vmatpush.msra.mxu0 0.0
  %228 = vmatpush.msra.mxu0 0.0
  %229 = vmatpush.msra.mxu0 0.0
  %230 = vmatpush.msra.mxu0 0.0
  %231 = vmatpush.msra.mxu0 0.0
  %232 = vmatpush.msra.mxu0 %v208
  %233 = vmatpush.msra.mxu0 %v205
  %234 = vmatpush.msra.mxu0 %v202
  %235 = vmatpush.msra.mxu0 %v199
  %236 = vmatmul.f32.gmra.mxu0 %v212
  %v237 = vpop.f32.mrf.mxu0
  %v238 = vadd.f32 0.0, %v237
  %239 = vmatmul.f32.gmra.mxu0 %v215
  %v240 = vpop.f32.mrf.mxu0
  %v241 = vadd.f32 0.0, %v240
  %242 = vmatmul.f32.gmra.mxu0 %v218
  %v243 = vpop.f32.mrf.mxu0
  %v244 = vadd.f32 0.0, %v243
  %245 = vdwg.mxu0
  %v246 = vrot.slane %v17, 1
  %v247 = vrot.slane %v17, 2
  %v248 = vrot.slane %v17, 3
  %v249 = vrot.slane %v17, 4
  %v250 = vrot.slane %v17, 5
  %v251 = vrot.slane %v17, 6
  %v252 = vrot.slane %v17, 7
  %v253 = vperm.slane %v17, 0
  %v254 = vperm.slane %v246, 0
  %v255 = vperm.slane %v247, 0
  %v256 = vperm.slane %v248, 0
  %v257 = vperm.slane %v249, 0
  %v258 = vperm.slane %v250, 0
  %v259 = vperm.slane %v251, 0
  %v260 = vperm.slane %v252, 0
  %vm261 = vcmp.eq.s32.totalorder %v253, %v27
  %vm262 = vcmp.eq.s32.totalorder %v253, %v28
  %vm263 = vcmp.eq.s32.totalorder %v253, %v29
  %vm264 = vcmp.eq.s32.totalorder %v254, %v27
  %vm265 = vcmp.eq.s32.totalorder %v254, %v28
  %vm266 = vcmp.eq.s32.totalorder %v254, %v29
  %vm267 = vcmp.eq.s32.totalorder %v255, %v27
  %vm268 = vcmp.eq.s32.totalorder %v255, %v28
  %vm269 = vcmp.eq.s32.totalorder %v255, %v29
  %vm270 = vcmp.eq.s32.totalorder %v256, %v27
  %vm271 = vcmp.eq.s32.totalorder %v256, %v28
  %vm272 = vcmp.eq.s32.totalorder %v256, %v29
  %vm273 = vcmp.eq.s32.totalorder %v257, %v27
  %vm274 = vcmp.eq.s32.totalorder %v257, %v28
  %vm275 = vcmp.eq.s32.totalorder %v257, %v29
  %vm276 = vcmp.eq.s32.totalorder %v258, %v27
  %vm277 = vcmp.eq.s32.totalorder %v258, %v28
  %vm278 = vcmp.eq.s32.totalorder %v258, %v29
  %vm279 = vcmp.eq.s32.totalorder %v259, %v27
  %vm280 = vcmp.eq.s32.totalorder %v259, %v28
  %vm281 = vcmp.eq.s32.totalorder %v259, %v29
  %vm282 = vcmp.eq.s32.totalorder %v260, %v27
  %vm283 = vcmp.eq.s32.totalorder %v260, %v28
  %vm284 = vcmp.eq.s32.totalorder %v260, %v29
  %v285 = vsel %vm261, %v238, 0.0
  %v286 = vsel %vm262, %v241, 0.0
  %v287 = vsel %vm263, %v244, 0.0
  %v288 = vsel %vm264, %v238, 0.0
  %v289 = vsel %vm265, %v241, 0.0
  %v290 = vsel %vm266, %v244, 0.0
  %v291 = vsel %vm267, %v238, 0.0
  %v292 = vsel %vm268, %v241, 0.0
  %v293 = vsel %vm269, %v244, 0.0
  %v294 = vsel %vm270, %v238, 0.0
  %v295 = vsel %vm271, %v241, 0.0
  %v296 = vsel %vm272, %v244, 0.0
  %v297 = vsel %vm273, %v238, 0.0
  %v298 = vsel %vm274, %v241, 0.0
  %v299 = vsel %vm275, %v244, 0.0
  %v300 = vsel %vm276, %v238, 0.0
  %v301 = vsel %vm277, %v241, 0.0
  %v302 = vsel %vm278, %v244, 0.0
  %v303 = vsel %vm279, %v238, 0.0
  %v304 = vsel %vm280, %v241, 0.0
  %v305 = vsel %vm281, %v244, 0.0
  %v306 = vsel %vm282, %v238, 0.0
  %v307 = vsel %vm283, %v241, 0.0
  %v308 = vsel %vm284, %v244, 0.0
  %v309 = vsel %vm117, %v285, 0.0
  %v310 = vsel %vm117, %v286, 0.0
  %v311 = vadd.f32 %v309, %v310
  %v312 = vsel %vm148, %v287, 0.0
  %v313 = vadd.f32 %v311, %v312
  %v314 = vrot.slane %v313, 4
  %v315 = vadd.f32 %v313, %v314
  %v316 = vrot.slane %v315, 2
  %v317 = vadd.f32 %v315, %v316
  %v318 = vrot.slane %v317, 1
  %v319 = vadd.f32 %v317, %v318
  %v320 = vsel %vm117, %v288, 0.0
  %v321 = vsel %vm117, %v289, 0.0
  %v322 = vadd.f32 %v320, %v321
  %v323 = vsel %vm148, %v290, 0.0
  %v324 = vadd.f32 %v322, %v323
  %v325 = vrot.slane %v324, 4
  %v326 = vadd.f32 %v324, %v325
  %v327 = vrot.slane %v326, 2
  %v328 = vadd.f32 %v326, %v327
  %v329 = vrot.slane %v328, 1
  %v330 = vadd.f32 %v328, %v329
  %v331 = vsel %vm117, %v291, 0.0
  %v332 = vsel %vm117, %v292, 0.0
  %v333 = vadd.f32 %v331, %v332
  %v334 = vsel %vm148, %v293, 0.0
  %v335 = vadd.f32 %v333, %v334
  %v336 = vrot.slane %v335, 4
  %v337 = vadd.f32 %v335, %v336
  %v338 = vrot.slane %v337, 2
  %v339 = vadd.f32 %v337, %v338
  %v340 = vrot.slane %v339, 1
  %v341 = vadd.f32 %v339, %v340
  %v342 = vsel %vm117, %v294, 0.0
  %v343 = vsel %vm117, %v295, 0.0
  %v344 = vadd.f32 %v342, %v343
  %v345 = vsel %vm148, %v296, 0.0
  %v346 = vadd.f32 %v344, %v345
  %v347 = vrot.slane %v346, 4
  %v348 = vadd.f32 %v346, %v347
  %v349 = vrot.slane %v348, 2
  %v350 = vadd.f32 %v348, %v349
  %v351 = vrot.slane %v350, 1
  %v352 = vadd.f32 %v350, %v351
  %v353 = vsel %vm117, %v297, 0.0
  %v354 = vsel %vm117, %v298, 0.0
  %v355 = vadd.f32 %v353, %v354
  %v356 = vsel %vm148, %v299, 0.0
  %v357 = vadd.f32 %v355, %v356
  %v358 = vrot.slane %v357, 4
  %v359 = vadd.f32 %v357, %v358
  %v360 = vrot.slane %v359, 2
  %v361 = vadd.f32 %v359, %v360
  %v362 = vrot.slane %v361, 1
  %v363 = vadd.f32 %v361, %v362
  %v364 = vsel %vm117, %v300, 0.0
  %v365 = vsel %vm117, %v301, 0.0
  %v366 = vadd.f32 %v364, %v365
  %v367 = vsel %vm148, %v302, 0.0
  %v368 = vadd.f32 %v366, %v367
  %v369 = vrot.slane %v368, 4
  %v370 = vadd.f32 %v368, %v369
  %v371 = vrot.slane %v370, 2
  %v372 = vadd.f32 %v370, %v371
  %v373 = vrot.slane %v372, 1
  %v374 = vadd.f32 %v372, %v373
  %v375 = vsel %vm117, %v303, 0.0
  %v376 = vsel %vm117, %v304, 0.0
  %v377 = vadd.f32 %v375, %v376
  %v378 = vsel %vm148, %v305, 0.0
  %v379 = vadd.f32 %v377, %v378
  %v380 = vrot.slane %v379, 4
  %v381 = vadd.f32 %v379, %v380
  %v382 = vrot.slane %v381, 2
  %v383 = vadd.f32 %v381, %v382
  %v384 = vrot.slane %v383, 1
  %v385 = vadd.f32 %v383, %v384
  %v386 = vsel %vm117, %v306, 0.0
  %v387 = vsel %vm117, %v307, 0.0
  %v388 = vadd.f32 %v386, %v387
  %v389 = vsel %vm148, %v308, 0.0
  %v390 = vadd.f32 %v388, %v389
  %v391 = vrot.slane %v390, 4
  %v392 = vadd.f32 %v390, %v391
  %v393 = vrot.slane %v392, 2
  %v394 = vadd.f32 %v392, %v393
  %v395 = vrot.slane %v394, 1
  %v396 = vadd.f32 %v394, %v395
  %v397 = vxor.u32 %v319, 2147483648
  %v398 = vxor.u32 %v330, 2147483648
  %v399 = vxor.u32 %v341, 2147483648
  %v400 = vxor.u32 %v352, 2147483648
  %v401 = vxor.u32 %v363, 2147483648
  %v402 = vxor.u32 %v374, 2147483648
  %v403 = vxor.u32 %v385, 2147483648
  %v404 = vxor.u32 %v396, 2147483648
  %v405 = vmul.f32 %v397, 1.442695
  %v406 = vpow.pop %v405
  %v407 = vmul.f32 %v398, 1.442695
  %v408 = vpow.pop %v407
  %v409 = vmul.f32 %v399, 1.442695
  %v410 = vpow.pop %v409
  %v411 = vmul.f32 %v400, 1.442695
  %v412 = vpow.pop %v411
  %v413 = vmul.f32 %v401, 1.442695
  %v414 = vpow.pop %v413
  %v415 = vmul.f32 %v402, 1.442695
  %v416 = vpow.pop %v415
  %v417 = vmul.f32 %v403, 1.442695
  %v418 = vpow.pop %v417
  %v419 = vmul.f32 %v404, 1.442695
  %v420 = vpow.pop %v419
  %v421 = vadd.f32 %v406, 1.0
  %v422 = vadd.f32 %v408, 1.0
  %v423 = vadd.f32 %v410, 1.0
  %v424 = vadd.f32 %v412, 1.0
  %v425 = vadd.f32 %v414, 1.0
  %v426 = vadd.f32 %v416, 1.0
  %v427 = vadd.f32 %v418, 1.0
  %v428 = vadd.f32 %v420, 1.0
  %v429 = vrcp.pop %v421
  %v430 = vmul.f32 %v421, %v429
  %v431 = vsub.f32 1.0, %v430
  %v432 = vmul.f32 %v429, %v431
  %v433 = vadd.f32 %v429, %v432
  %vm434 = vweird.f32 %v421
  %vm435 = vweird.f32 %v429
  %vm436 = vmor %vm434, %vm435
  %v437 = vsel %vm436, %v429, %v433
  %v438 = vand.u32 2147483647, %v421
  %vm439 = vcmp.eq.f32.partialorder %v438, 8.507059e+37
  %v440 = vand.u32 %v421, 2147483648
  %v441 = vor.u32 1.1754944e-38, %v440
  %v442 = vsel %vm439, %v441, %v437
  %v443 = vmul.f32 1.0, %v442
  %v444 = vrcp.pop %v422
  %v445 = vmul.f32 %v422, %v444
  %v446 = vsub.f32 1.0, %v445
  %v447 = vmul.f32 %v444, %v446
  %v448 = vadd.f32 %v444, %v447
  %vm449 = vweird.f32 %v422
  %vm450 = vweird.f32 %v444
  %vm451 = vmor %vm449, %vm450
  %v452 = vsel %vm451, %v444, %v448
  %v453 = vand.u32 2147483647, %v422
  %vm454 = vcmp.eq.f32.partialorder %v453, 8.507059e+37
  %v455 = vand.u32 %v422, 2147483648
  %v456 = vor.u32 1.1754944e-38, %v455
  %v457 = vsel %vm454, %v456, %v452
  %v458 = vmul.f32 1.0, %v457
  %v459 = vrcp.pop %v423
  %v460 = vmul.f32 %v423, %v459
  %v461 = vsub.f32 1.0, %v460
  %v462 = vmul.f32 %v459, %v461
  %v463 = vadd.f32 %v459, %v462
  %vm464 = vweird.f32 %v423
  %vm465 = vweird.f32 %v459
  %vm466 = vmor %vm464, %vm465
  %v467 = vsel %vm466, %v459, %v463
  %v468 = vand.u32 2147483647, %v423
  %vm469 = vcmp.eq.f32.partialorder %v468, 8.507059e+37
  %v470 = vand.u32 %v423, 2147483648
  %v471 = vor.u32 1.1754944e-38, %v470
  %v472 = vsel %vm469, %v471, %v467
  %v473 = vmul.f32 1.0, %v472
  %v474 = vrcp.pop %v424
  %v475 = vmul.f32 %v424, %v474
  %v476 = vsub.f32 1.0, %v475
  %v477 = vmul.f32 %v474, %v476
  %v478 = vadd.f32 %v474, %v477
  %vm479 = vweird.f32 %v424
  %vm480 = vweird.f32 %v474
  %vm481 = vmor %vm479, %vm480
  %v482 = vsel %vm481, %v474, %v478
  %v483 = vand.u32 2147483647, %v424
  %vm484 = vcmp.eq.f32.partialorder %v483, 8.507059e+37
  %v485 = vand.u32 %v424, 2147483648
  %v486 = vor.u32 1.1754944e-38, %v485
  %v487 = vsel %vm484, %v486, %v482
  %v488 = vmul.f32 1.0, %v487
  %v489 = vrcp.pop %v425
  %v490 = vmul.f32 %v425, %v489
  %v491 = vsub.f32 1.0, %v490
  %v492 = vmul.f32 %v489, %v491
  %v493 = vadd.f32 %v489, %v492
  %vm494 = vweird.f32 %v425
  %vm495 = vweird.f32 %v489
  %vm496 = vmor %vm494, %vm495
  %v497 = vsel %vm496, %v489, %v493
  %v498 = vand.u32 2147483647, %v425
  %vm499 = vcmp.eq.f32.partialorder %v498, 8.507059e+37
  %v500 = vand.u32 %v425, 2147483648
  %v501 = vor.u32 1.1754944e-38, %v500
  %v502 = vsel %vm499, %v501, %v497
  %v503 = vmul.f32 1.0, %v502
  %v504 = vrcp.pop %v426
  %v505 = vmul.f32 %v426, %v504
  %v506 = vsub.f32 1.0, %v505
  %v507 = vmul.f32 %v504, %v506
  %v508 = vadd.f32 %v504, %v507
  %vm509 = vweird.f32 %v426
  %vm510 = vweird.f32 %v504
  %vm511 = vmor %vm509, %vm510
  %v512 = vsel %vm511, %v504, %v508
  %v513 = vand.u32 2147483647, %v426
  %vm514 = vcmp.eq.f32.partialorder %v513, 8.507059e+37
  %v515 = vand.u32 %v426, 2147483648
  %v516 = vor.u32 1.1754944e-38, %v515
  %v517 = vsel %vm514, %v516, %v512
  %v518 = vmul.f32 1.0, %v517
  %v519 = vrcp.pop %v427
  %v520 = vmul.f32 %v427, %v519
  %v521 = vsub.f32 1.0, %v520
  %v522 = vmul.f32 %v519, %v521
  %v523 = vadd.f32 %v519, %v522
  %vm524 = vweird.f32 %v427
  %vm525 = vweird.f32 %v519
  %vm526 = vmor %vm524, %vm525
  %v527 = vsel %vm526, %v519, %v523
  %v528 = vand.u32 2147483647, %v427
  %vm529 = vcmp.eq.f32.partialorder %v528, 8.507059e+37
  %v530 = vand.u32 %v427, 2147483648
  %v531 = vor.u32 1.1754944e-38, %v530
  %v532 = vsel %vm529, %v531, %v527
  %v533 = vmul.f32 1.0, %v532
  %v534 = vrcp.pop %v428
  %v535 = vmul.f32 %v428, %v534
  %v536 = vsub.f32 1.0, %v535
  %v537 = vmul.f32 %v534, %v536
  %v538 = vadd.f32 %v534, %v537
  %vm539 = vweird.f32 %v428
  %vm540 = vweird.f32 %v534
  %vm541 = vmor %vm539, %vm540
  %v542 = vsel %vm541, %v534, %v538
  %v543 = vand.u32 2147483647, %v428
  %vm544 = vcmp.eq.f32.partialorder %v543, 8.507059e+37
  %v545 = vand.u32 %v428, 2147483648
  %v546 = vor.u32 1.1754944e-38, %v545
  %v547 = vsel %vm544, %v546, %v542
  %v548 = vmul.f32 1.0, %v547
  %vm557 = vcmask 1041409
  %v558 = vsel %vm557, %v458, %v443
  %vm559 = vcmask 1042434
  %v560 = vsel %vm559, %v473, %v558
  %vm561 = vcmask 1043459
  %v562 = vsel %vm561, %v488, %v560
  %vm563 = vcmask 1044484
  %v564 = vsel %vm563, %v503, %v562
  %vm565 = vcmask 1045509
  %v566 = vsel %vm565, %v518, %v564
  %vm567 = vcmask 1046534
  %v568 = vsel %vm567, %v533, %v566
  %vm569 = vcmask 1047559
  %v570 = vsel %vm569, %v548, %v568
  %572 = vst.msk [vmem:[%s4] sm:$0xff] %vm117, %v570
  // Predicated region
  $region18: #{tpu_custom_call.1} parent=0 // pred_check
    _
  $region19: #{tpu_custom_call.1} parent=0 // pred_check_branch
    %574 = sbr.rel (0) target = $region21
  $region20: #{tpu_custom_call.1} parent=0 // pred_region
    _
  $region21: #{tpu_custom_call.1} parent=0 // pred_fallthru
    _
  // Predicated region
  $region22: #{tpu_custom_call.1} parent=0 // pred_check
    _
  $region23: #{tpu_custom_call.1} parent=0 // pred_check_branch
    %576 = sbr.rel (0) target = $region25
  $region24: #{tpu_custom_call.1} parent=0 // pred_region
    _
  $region25: #{tpu_custom_call.1} parent=0 // pred_fallthru
    _

</llo_original>
